<compile_context>
chip_gen: v7x
topology: tpu7x:2x2x1
jax: 0.10.0
libtpu: 0.0.40
codegen_flags: <defaults>
</compile_context>

<pallas_src>
import jax
import jax.numpy as jnp
from jax.experimental import pallas as pl
from jax.experimental.pallas import tpu as pltpu


def _round_up(x: int, m: int) -> int:
    return (x + m - 1) // m * m


# ----------------------------- Pallas kernel ------------------------------ #

def _linear_kernel(x_ref, w_ref, b_ref, o_ref):
    # x_ref: (tm, K)  f32 activation tile
    # w_ref: (K, tn)  bf16 pre-transposed weight tile
    # b_ref: (1, tn)  f32 bias tile
    # o_ref: (tm, tn) output tile (x dtype)
    x = x_ref[...].astype(jnp.bfloat16)          # VPU cast; MXU consumes bf16 natively
    acc = jnp.dot(x, w_ref[...], preferred_element_type=jnp.float32)
    o_ref[...] = (acc + b_ref[...]).astype(o_ref.dtype)   # f32 epilogue (v5e: no bf16 VPU)


def pallas_linear(x2d, wt_pad, b_pad, n_out, *, tile_m: int = 2048, tile_n: int = 512):
    """y = x2d @ W^T + b, with W^T stored pre-transposed as (K, Np) bf16.

    x2d:    (M, K)  float32
    wt_pad: (K, Np) bfloat16  (Np == N when N <= 128 or N % 128 == 0)
    b_pad:  (1, Np) float32
    Returns (M, n_out) in x2d.dtype.
    """
    M, K = x2d.shape
    Np = wt_pad.shape[1]

    tm = min(tile_m, M)      # full-dim block when M is small; ragged last tile otherwise
    tn = min(tile_n, Np)
    grid = (pl.cdiv(M, tm), pl.cdiv(Np, tn))

    x_bytes = x2d.dtype.itemsize
    w_bytes = wt_pad.dtype.itemsize
    o_bytes = x2d.dtype.itemsize

    # Double-buffered per-step tile budget -> scoped VMEM limit with headroom.
    per_step = (tm * K * x_bytes) + (K * tn * w_bytes) + (tn * b_pad.dtype.itemsize) \
               + (tm * tn * o_bytes)
    vmem_limit = int(min(max(4 * 2 * per_step, 16 << 20), 64 << 20))

    cost = pl.CostEstimate(
        flops=2 * M * K * Np,
        transcendentals=0,
        bytes_accessed=(M * K * x_bytes) + (K * Np * w_bytes)
        + (Np * b_pad.dtype.itemsize) + (M * Np * o_bytes),
    )

    y = pl.pallas_call(
        _linear_kernel,
        out_shape=jax.ShapeDtypeStruct((M, Np), x2d.dtype),
        grid=grid,
        in_specs=[
            pl.BlockSpec((tm, K), lambda i, j: (i, 0)),   # activation tile (K un-tiled)
            pl.BlockSpec((K, tn), lambda i, j: (0, j)),   # weight N-tile
            pl.BlockSpec((1, tn), lambda i, j: (0, j)),   # bias N-tile
        ],
        out_specs=pl.BlockSpec((tm, tn), lambda i, j: (i, j)),
        compiler_params=pltpu.CompilerParams(
            # Independent (M, N) tiles -> shardable across v7x's 2 TensorCores.
            dimension_semantics=("parallel", "parallel"),
            vmem_limit_bytes=vmem_limit,
        ),
        cost_estimate=cost,
    )(x2d, wt_pad, b_pad)

    if Np != n_out:                 # only when N > 128 and not a multiple of 128
        y = y[:, :n_out]
    return y


# ------------------------ wrapped "module" + wrapper ----------------------- #

class WrappedLinear:
    """Stand-in for the nn.Module `m` wrapped by AbstractGradSampleModule."""

    def __init__(self, hidden: int, key):
        kw, kb = jax.random.split(key)
        # PyTorch nn.Linear layout: weight (out_features, in_features), bias (out,)
        self.weight = jax.random.normal(kw, (hidden, hidden), jnp.float32) * 0.05
        self.bias = jax.random.normal(kb, (hidden,), jnp.float32) * 0.05

        # Layout plumbing done ONCE at construction (free per call):
        #  - pre-transpose to (K, N): no in-kernel transpose (XLU) needed,
        #  - pad N to a multiple of 128 only when needed (N > 128, non-multiple);
        #    for small N a full-dim block is legal and avoids 128/N over-write,
        #  - weight stored bf16 (halves weight HBM bytes; MXU is bf16-native),
        #    bias kept f32 so the epilogue add stays on the f32 VPU path.
        N, K = self.weight.shape
        Np = _round_up(N, 128) if (N > 128 and N % 128 != 0) else N
        self._n = N
        wt = jnp.zeros((K, Np), jnp.float32).at[:, :N].set(self.weight.T)
        self._wt_pad = wt.astype(jnp.bfloat16)
        self._b_pad = jnp.zeros((1, Np), jnp.float32).at[0, :N].set(self.bias)

    def parameters(self):
        return {"weight": self.weight, "bias": self.bias}

    def __call__(self, x):
        # x: [B, S, H] (batch_first=True) -> [B, S, H]
        B, S, H = x.shape
        y2d = pallas_linear(x.reshape(B * S, H), self._wt_pad, self._b_pad, self._n)
        return y2d.reshape(B, S, self._n)


class GradSampleModule:
    """JAX analogue of AbstractGradSampleModule (concrete pass-through forward).

    Mirrors the PyTorch wrapper: stores the wrapped module, batch_first /
    loss_reduction flags, and per-parameter grad_sample / _forward_counter
    bookkeeping.  Forward delegates to the wrapped module (Pallas kernel).
    """

    def __init__(self, m, *, batch_first: bool = True, loss_reduction: str = "mean"):
        self._module = m
        self.batch_first = batch_first
        self.loss_reduction = loss_reduction
        # Equivalent of `p.grad_sample = None; p._forward_counter = 0`.
        self._grad_sample = {name: None for name in m.parameters()}
        self._forward_counter = {name: 0 for name in m.parameters()}
        # TODO(synk): per-sample gradient capture (backward hooks / the
        # per-sample outer-product kernel) has no forward-pass Pallas
        # equivalent here; only the bookkeeping state is kept.

    def forward(self, x):
        for name in self._forward_counter:
            self._forward_counter[name] += 1
        return self._module(x)

    __call__ = forward

    def __getattr__(self, item):
        # Mirrors AbstractGradSampleModule.__getattr__: fall through to the
        # wrapped module's attributes when lookup on the wrapper fails.
        module = self.__dict__.get("_module")
        if module is not None and hasattr(module, item):
            return getattr(module, item)
        raise AttributeError(item)

    def zero_grad(self, set_to_none: bool = False):
        self.set_grad_sample_to_none()

    def set_grad_sample_to_none(self):
        for name in self._grad_sample:
            self._grad_sample[name] = None

    def del_grad_sample(self):
        self.set_grad_sample_to_none()

    def to_standard_module(self):
        self._close()
        return self._module

    def _close(self):
        self.del_grad_sample()

    def __repr__(self):
        return f"{type(self).__name__}(WrappedLinear)"


# ---------------------------------- main ----------------------------------- #

if __name__ == "__main__":
    key = jax.random.PRNGKey(0)
    k_x, k_m = jax.random.split(key)

    B, S, H = 2, 8, 32           # batch=2, seq=8, hidden=32; batch-first layout
    x = jax.random.normal(k_x, (B, S, H), jnp.float32)

    wrapped = WrappedLinear(H, k_m)
    gsm = GradSampleModule(wrapped, batch_first=True, loss_reduction="mean")

    y = gsm(x)
    y = jax.block_until_ready(y)
    assert y.shape == (B, S, H)

    # Tight check against a bf16-faithful reference (kernel feeds bf16 x / bf16 W
    # to the MXU and accumulates + adds bias in f32).
    xb = x.reshape(-1, H).astype(jnp.bfloat16).astype(jnp.float32)
    wb = wrapped._wt_pad[:, :H].astype(jnp.float32)          # (K, N)
    y_ref = (xb @ wb + wrapped.bias).reshape(B, S, H)
    assert jnp.allclose(y, y_ref, atol=1e-4, rtol=1e-4)

    # Loose sanity check against the pure-f32 PyTorch-equivalent forward
    # (bf16 input truncation bounds the deviation at this scale).
    y_f32 = x @ wrapped.weight.T + wrapped.bias
    assert jnp.allclose(y, y_f32, atol=2e-2, rtol=2e-2)

    print("KERNEL_OK")
</pallas_src>

<mosaic_0001>
module attributes {stable_mosaic.version = 11 : i64} {
  func.func @_linear_kernel(%arg0: i32, %arg1: i32, %arg2: memref<16x32xf32, #tpu.memory_space<vmem>>, %arg3: memref<32x32xbf16, #tpu.memory_space<vmem>>, %arg4: memref<1x32xf32, #tpu.memory_space<vmem>>, %arg5: memref<16x32xf32, #tpu.memory_space<vmem>>) attributes {dimension_semantics = [#tpu.dimension_semantics<parallel>, #tpu.dimension_semantics<parallel>], iteration_bounds = array<i64: 1, 1>, scalar_prefetch = 0 : i64, scratch_operands = 0 : i64, tpu.core_type = #tpu.core_type<tc>, window_params = [{transform_indices = @transform_0, window_bounds = array<i64: 16, 32>}, {transform_indices = @transform_1, window_bounds = array<i64: 32, 32>}, {transform_indices = @transform_2, window_bounds = array<i64: 1, 32>}, {transform_indices = @transform_3, window_bounds = array<i64: 16, 32>}]} {
    %c0 = arith.constant 0 : index
    %c0_0 = arith.constant 0 : index
    %0 = vector.load %arg2[%c0, %c0_0] : memref<16x32xf32, #tpu.memory_space<vmem>>, vector<16x32xf32>
    %1 = arith.truncf %0 : vector<16x32xf32> to vector<16x32xbf16>
    %c0_1 = arith.constant 0 : index
    %c0_2 = arith.constant 0 : index
    %2 = vector.load %arg3[%c0_1, %c0_2] : memref<32x32xbf16, #tpu.memory_space<vmem>>, vector<32x32xbf16>
    %cst = arith.constant dense<0.000000e+00> : vector<16x32xf32>
    %3 = tpu.matmul %1, %2, %cst {dimension_numbers = #tpu.dot_dimension_numbers<[1], [0], [0], [1], [0, 0, 1, 1], [], []>} : vector<16x32xbf16>, vector<32x32xbf16>, vector<16x32xf32> -> vector<16x32xf32>
    %c0_3 = arith.constant 0 : index
    %c0_4 = arith.constant 0 : index
    %4 = vector.load %arg4[%c0_3, %c0_4] : memref<1x32xf32, #tpu.memory_space<vmem>>, vector<1x32xf32>
    %5 = vector.broadcast %4 : vector<1x32xf32> to vector<16x32xf32>
    %6 = arith.addf %3, %5 : vector<16x32xf32>
    %c0_5 = arith.constant 0 : index
    %c0_6 = arith.constant 0 : index
    %7 = vector.load %arg5[%c0_5, %c0_6] : memref<16x32xf32, #tpu.memory_space<vmem>>, vector<16x32xf32>
    tpu.vector_store %arg5[%c0_5, %c0_6], %6 {strides = array<i32>} : memref<16x32xf32, #tpu.memory_space<vmem>>, vector<16x32xf32>,
    return
  }
  func.func @transform_0(%arg0: i32, %arg1: i32) -> (i32, i32) {
    %c0_i32 = arith.constant 0 : i32
    %c0_i32_0 = arith.constant 0 : i32
    return %arg0, %c0_i32 : i32, i32
  }
  func.func @transform_1(%arg0: i32, %arg1: i32) -> (i32, i32) {
    %c0_i32 = arith.constant 0 : i32
    %c0_i32_0 = arith.constant 0 : i32
    return %c0_i32, %arg1 : i32, i32
  }
  func.func @transform_2(%arg0: i32, %arg1: i32) -> (i32, i32) {
    %c0_i32 = arith.constant 0 : i32
    %c0_i32_0 = arith.constant 0 : i32
    return %c0_i32, %arg1 : i32, i32
  }
  func.func @transform_3(%arg0: i32, %arg1: i32) -> (i32, i32) {
    %c0_i32 = arith.constant 0 : i32
    return %arg0, %arg1 : i32, i32
  }
}

</mosaic_0001>

<llo_original>
// kernel: tpu_custom_call.1
$region0: #{tpu_custom_call.1}
  #allocation0 [shape = 'u32[]', space=smem, size = 0x4, offset = 0x4, fixed_abs, tag = 'smem constant byte address 0x4 - core index']
  #allocation1 [shape = 'u32[144,128]{1,0:T(1,128)}', space=vmem, size = 0x12000, scoped, tag = 'internal scratch']
  %s0 = inlined_call_operand.hbm [shape: f32[16,32], index: 0, kind: input, shape index: {}]
  %s1 = inlined_call_operand.hbm [shape: bf16[32,32], index: 1, kind: input, shape index: {}]
  %s2 = inlined_call_operand.vmem [shape: f32[1,32], index: 2, kind: input, shape index: {}]
  %s3 = inlined_call_operand.hbm [shape: f32[16,32], index: 3, kind: output, shape index: {}]
  %s4 = sld [smem:[#allocation0]]
  $region30: #{tpu_custom_call.1} parent=0
    _
  %s6 = ssub.s32 1, %s4
  %s7 = scalar_select 0, %s6, %s4
  $region1: #{tpu_custom_call.1} parent=0
    #allocation2 [shape = 'u8[8192]{0}', space=vmem, size = 0x2000, scoped, tag = 'input window, operand 0, single buffered']
    #allocation3 [shape = 's32[1]{0}', space=sflag, size = 0x4, scoped, tag = 'scoped memory for tpu_custom_call.1']
    #allocation4 [shape = 's32[1]{0}', space=sflag, size = 0x4, scoped, tag = 'scoped memory for tpu_custom_call.1']
    #allocation5 [shape = 'u8[8192]{0}', space=vmem, size = 0x2000, scoped, tag = 'input window, operand 1, single buffered']
    #allocation6 [shape = 's32[1]{0}', space=sflag, size = 0x4, scoped, tag = 'scoped memory for tpu_custom_call.1']
    #allocation7 [shape = 'u8[8192]{0}', space=vmem, size = 0x2000, scoped, tag = 'output window, operand 0, single buffered']
    %8 = vsyncpa [#allocation3], 0
    %9 = vsyncpa [#allocation6], 0
    %10 = vsyncpa [#allocation4], 0
    // Predicated region
    $region2: #{tpu_custom_call.1} parent=1 // pred_check
      _
    $region3: #{tpu_custom_call.1} parent=1 // pred_check_branch
      %12 = sbr.rel (0) target = $region5
    $region4: #{tpu_custom_call.1} parent=1 // pred_region
      %s14 = ssub.s32 256, 256
      %15 = vsyncadd [#allocation3], %s14
      %s16 = sshll.u32 [#allocation2], 4
      %s17 = int_to_ptr.vmem [resolvable:$true] %s16
      %22 = dma.hbm_to_vmem [thread:$0]  %s0, 256, %s17, [#allocation3], 128, 128, 8
    $region5: #{tpu_custom_call.1} parent=1 // pred_fallthru
      _
    // Predicated region
    $region6: #{tpu_custom_call.1} parent=1 // pred_check
      _
    $region7: #{tpu_custom_call.1} parent=1 // pred_check_branch
      %24 = sbr.rel (0) target = $region9
    $region8: #{tpu_custom_call.1} parent=1 // pred_region
      %s26 = ssub.s32 256, 256
      %27 = vsyncadd [#allocation6], %s26
      %s28 = sshll.u32 [#allocation5], 4
      %s29 = int_to_ptr.vmem [resolvable:$true] %s28
      %34 = dma.hbm_to_vmem [thread:$0]  %s1, 256, %s29, [#allocation6], 64, 64, 4
    $region9: #{tpu_custom_call.1} parent=1 // pred_fallthru
      _
    // Predicated region
    $region10: #{tpu_custom_call.1} parent=1 // pred_check
      _
    $region11: #{tpu_custom_call.1} parent=1 // pred_check_branch
      %36 = sbr.rel (0) target = $region13
    $region12: #{tpu_custom_call.1} parent=1 // pred_region
      _
    $region13: #{tpu_custom_call.1} parent=1 // pred_fallthru
      _
    // Predicated region
    $region14: #{tpu_custom_call.1} parent=1 // pred_check
      _
    $region15: #{tpu_custom_call.1} parent=1 // pred_check_branch
      %38 = sbr.rel (0) target = $region17
    $region16: #{tpu_custom_call.1} parent=1 // pred_region
      %39 = dma.done [#allocation3], 256
    $region17: #{tpu_custom_call.1} parent=1 // pred_fallthru
      _
    // Predicated region
    $region18: #{tpu_custom_call.1} parent=1 // pred_check
      _
    $region19: #{tpu_custom_call.1} parent=1 // pred_check_branch
      %41 = sbr.rel (0) target = $region21
    $region20: #{tpu_custom_call.1} parent=1 // pred_region
      %42 = dma.done [#allocation6], 256
    $region21: #{tpu_custom_call.1} parent=1 // pred_fallthru
      _
    %v44 = vld [vmem:[#allocation2] sm:$0xff]
    %v45 = vld [vmem:[#allocation2 + $0x8] sm:$0xff]
    %v46 = vpack.c.bf16 %v45, %v44
    %v47 = vld [vmem:[#allocation5] sm:$0xf]
    %v48 = vld [vmem:[#allocation5 + $0x4] sm:$0xf]
    %v49 = vld [vmem:[#allocation5 + $0x8] sm:$0xf]
    %v50 = vld [vmem:[#allocation5 + $0xc] sm:$0xf]
    %v51 = vld [vmem:[%s2] sm:$0x1]
    %v53 = vlaneseq
    %v54 = vshrl.u32 %v53, 7
    %v55 = vsub.s32 0, %v54
    %v56 = vrot.slane %v51, %v55
    %v62 = vunpack.c.l.b16 %v47
    %v63 = vunpack.c.l.b16 %v48
    %v64 = vunpack.c.l.b16 %v49
    %v65 = vunpack.c.l.b16 %v50
    %v66 = vpack.c.b16 %v63, %v62
    %v67 = vpack.c.b16 %v65, %v64
    %vm70 = vcmask 261120
    %v72 = vsel %vm70, %v46, 0
    %74 = vmatprep.subr.bf16.mxu0 0
    %75 = vmatpush1.bf16.msra.mxu0 %v66
    %76 = vmatprep.subr.bf16.mxu0 0
    %77 = vmatpush1.bf16.msra.mxu0 %v67
    %78 = vmatprep.subr.bf16.mxu0 0
    %79 = vmatpush1.bf16.msra.mxu0 0
    %80 = vmatprep.subr.bf16.mxu0 0
    %81 = vmatpush1.bf16.msra.mxu0 0
    %82 = vmatprep.subr.bf16.mxu0 0
    %83 = vmatpush1.bf16.msra.mxu0 0
    %84 = vmatprep.subr.bf16.mxu0 0
    %85 = vmatpush1.bf16.msra.mxu0 0
    %86 = vmatprep.subr.bf16.mxu0 0
    %87 = vmatpush1.bf16.msra.mxu0 0
    %88 = vmatprep.subr.bf16.mxu0 0
    %89 = vmatpush1.bf16.msra.mxu0 0
    %90 = vmatprep.subr.bf16.mxu0 0
    %91 = vmatpush1.bf16.msra.mxu0 0
    %92 = vmatprep.subr.bf16.mxu0 0
    %93 = vmatpush1.bf16.msra.mxu0 0
    %94 = vmatprep.subr.bf16.mxu0 0
    %95 = vmatpush1.bf16.msra.mxu0 0
    %96 = vmatprep.subr.bf16.mxu0 0
    %97 = vmatpush1.bf16.msra.mxu0 0
    %98 = vmatprep.subr.bf16.mxu0 0
    %99 = vmatpush1.bf16.msra.mxu0 0
    %100 = vmatprep.subr.bf16.mxu0 0
    %101 = vmatpush1.bf16.msra.mxu0 0
    %102 = vmatprep.subr.bf16.mxu0 0
    %103 = vmatpush1.bf16.msra.mxu0 0
    %104 = vmatprep.subr.bf16.mxu0 0
    %105 = vmatpush1.bf16.msra.mxu0 0
    %106 = vmatprep.mubr.bf16.mxu0 0
    %107 = vmatmul.mubr.bf16.gmra.mrb[0].mxu0 %v72
    %v108 = vpop.f32.mrb[0].mxu0
    %v109 = vadd.f32 %v56, %v108
    %v110 = vpop.f32.mrb[0].mxu0
    %v111 = vpop.f32.mrb[0].mxu0
    %v112 = vadd.f32 %v56, %v111
    %v113 = vpop.f32.mrb[0].mxu0
    %114 = vdwg.mxu0
    %115 = vst.msk [vmem:[#allocation7] sm:$0xff] %vm70, %v109
    %116 = vst.msk [vmem:[#allocation7 + $0x8] sm:$0xff] %vm70, %v112
    // Predicated region
    $region22: #{tpu_custom_call.1} parent=1 // pred_check
      _
    $region23: #{tpu_custom_call.1} parent=1 // pred_check_branch
      %118 = sbr.rel (0) target = $region25
    $region24: #{tpu_custom_call.1} parent=1 // pred_region
      %s120 = ssub.s32 256, 256
      %121 = vsyncadd [#allocation4], %s120
      %s122 = sshll.u32 [#allocation7], 4
      %s123 = int_to_ptr.vmem [resolvable:$true] %s122
      %128 = dma.vmem_to_hbm [thread:$0]  %s123, 256, %s3, [#allocation4], 128, 128, 8
    $region25: #{tpu_custom_call.1} parent=1 // pred_fallthru
      _
    // Predicated region
    $region26: #{tpu_custom_call.1} parent=1 // pred_check
      _
    $region27: #{tpu_custom_call.1} parent=1 // pred_check_branch
      %130 = sbr.rel (0) target = $region29
    $region28: #{tpu_custom_call.1} parent=1 // pred_region
      %131 = dma.done [#allocation4], 256
    $region29: #{tpu_custom_call.1} parent=1 // pred_fallthru
      _
    %132 = vsyncpa [#allocation3], 1
    %133 = vsyncpa [#allocation6], 1
    %134 = vsyncpa [#allocation4], 1

</llo_original>
